<compile_context>
chip_gen: v7x
topology: tpu7x:2x2x1
jax: 0.10.0
libtpu: 0.0.40
codegen_flags: <defaults>
</compile_context>

<pallas_src>
import jax
import jax.numpy as jnp
from jax.experimental import pallas as pl
from jax.experimental.pallas import tpu as pltpu


# ----------------------------- kernel body ----------------------------------


def head_kernel(x_ref, w1_ref, b1_ref, w2_ref, o_ref, acc_ref):
    """fc1 (K-tiled matmul accumulate) -> relu -> partial fc2, fused."""
    k = pl.program_id(1)            # reduction step over fc1 contraction dim
    tk = w1_ref.shape[0]            # static K tile size

    @pl.when(k == 0)
    def _():
        acc_ref[...] = jnp.zeros_like(acc_ref)

    # x is VMEM-resident; slice the current K window (aligned to 128 lanes).
    start = pl.multiple_of(k * tk, 128)
    x_tile = x_ref[:, pl.ds(start, tk)]                       # (Bp, tk) bf16

    # Partial fc1: accumulate x_tile @ w1_tile into the f32 scratch
    # (MXU, bf16 inputs / f32 accumulator).
    acc_ref[...] += jnp.dot(x_tile, w1_ref[...],
                            preferred_element_type=jnp.float32)

    @pl.when(k == pl.num_programs(1) - 1)
    def _():
        h = jnp.maximum(acc_ref[...] + b1_ref[...], 0.0)      # fc1 bias + ReLU
        partial = jnp.dot(h, w2_ref[...],                     # partial fc2 over this H1 block
                          preferred_element_type=jnp.float32)
        o_ref[...] = partial[None].astype(o_ref.dtype)


# ----------------------------- host-side helpers ----------------------------


def _two_tensorcores() -> bool:
    """True on 2-TensorCore-per-chip parts (v7x-class); False otherwise."""
    try:
        kind = jax.devices()[0].device_kind.lower()
    except Exception:  # pragma: no cover - defensive
        return False
    return ("v7" in kind) or ("7x" in kind)


def _pick_tk(D: int, requested: int) -> int:
    """Largest multiple of 128 that divides D and is <= requested."""
    assert D % 128 == 0, D
    tk = min(requested, D)
    tk = max(128, (tk // 128) * 128)
    while D % tk != 0:
        tk -= 128
    return tk


def _make_w1_spec(tk, H1j, multi_buffer: bool):
    """w1 BlockSpec; on 2-TC chips request a 3-deep pipeline buffer."""
    index_map = lambda j, k: (k, j)
    if multi_buffer and hasattr(pl, "Buffered"):
        try:
            return pl.BlockSpec((tk, H1j), index_map,
                                pipeline_mode=pl.Buffered(3))
        except TypeError:
            pass
    return pl.BlockSpec((tk, H1j), index_map)


def prepare_head_params(w1, b1, w2, b2):
    """One-time parameter prep: fc1 weight stored as bf16 so the per-call
    path never re-casts the dominant HBM stream."""
    return (w1.astype(jnp.bfloat16),
            b1.astype(jnp.float32),
            w2.astype(jnp.float32),
            b2.astype(jnp.float32))


# ----------------------------- forward wrapper ------------------------------


def wav2vec2_ll_head(hidden, w1_bf16, b1, w2, b2, *, tk=3072):
    """hidden: (B, T, H) f32.  w1_bf16: (T*H, H1) bf16 (pre-converted once).
    b1: (1, H1) f32.  w2: (H1, C) f32.  b2: (1, C) f32."""
    B, T, H = hidden.shape
    D = T * H
    H1 = w1_bf16.shape[1]
    C = w2.shape[1]
    assert w1_bf16.shape[0] == D

    tk = _pick_tk(D, tk)

    # Split the fc1 output dim into J blocks (leading "parallel" grid axis)
    # only on 2-TensorCore chips, so each core streams a disjoint half of w1.
    # On single-TC v5e/v6e J=1: no doubled grid steps, full-width w1 tiles.
    two_tc = _two_tensorcores()
    J = 2 if (two_tc and H1 % 256 == 0) else 1
    H1j = H1 // J

    # Pad batch to a multiple of 16 rows (bf16 packs 16 sublanes per vreg).
    Bp = max(16, ((B + 15) // 16) * 16)

    # Glue: same as torch `out.reshape(out.shape[0], -1)`.  Casting x to bf16
    # per call is cheap (B*D elements) relative to the w1 stream.
    x = hidden.reshape(B, D)
    if Bp != B:
        x = jnp.pad(x, ((0, Bp - B), (0, 0)))
    x_bf16 = x.astype(jnp.bfloat16)

    # VMEM budget (x is DMA'd once but the pipeline still allocates 2 buffers
    # for it, so account for 2x).  Explicit limit so tk=3072 also fits v5e's
    # 16 MiB default scoped VMEM; clamp to 48 MiB on v7x (64 MiB physical).
    w1_bufs = 3 if two_tc else 2
    vmem_bytes = (
        2 * Bp * D * 2              # x, bf16, double-buffered by the pipeline
        + w1_bufs * tk * H1j * 2    # w1 tiles, bf16
        + 2 * H1j * 4               # b1 block
        + 2 * H1j * C * 4           # w2 block
        + Bp * H1j * 4              # f32 accumulator scratch
        + 2 * Bp * C * 4            # output tile
    )
    vmem_limit = int(vmem_bytes * 1.25) + (4 << 20)
    vmem_limit = max(vmem_limit, 32 << 20)
    vmem_limit = min(vmem_limit, (48 << 20) if two_tc else (100 << 20))

    partials = pl.pallas_call(
        head_kernel,
        out_shape=jax.ShapeDtypeStruct((J, Bp, C), jnp.float32),
        grid_spec=pltpu.PrefetchScalarGridSpec(
            num_scalar_prefetch=0,
            grid=(J, D // tk),
            in_specs=[
                pl.BlockSpec((Bp, D), lambda j, k: (0, 0)),      # x: fully resident
                _make_w1_spec(tk, H1j, two_tc),                  # fc1 weight: streamed over K
                pl.BlockSpec((1, H1j), lambda j, k: (0, j)),     # fc1 bias block (resident)
                pl.BlockSpec((H1j, C), lambda j, k: (j, 0)),     # fc2 weight block (resident)
            ],
            out_specs=pl.BlockSpec((1, Bp, C), lambda j, k: (j, 0, 0)),
            scratch_shapes=[pltpu.VMEM((Bp, H1j), jnp.float32)],
        ),
        compiler_params=pltpu.CompilerParams(
            dimension_semantics=("parallel", "arbitrary"),
            vmem_limit_bytes=vmem_limit),
    )(x_bf16, w1_bf16, b1, w2)

    # Trivial follow-up op (B*C elements): sum the per-H1-block fc2 partials,
    # drop batch padding BEFORE adding the fc2 bias once.
    return partials.sum(axis=0)[:B] + b2


# ----------------------------- self-test ------------------------------------


if __name__ == "__main__":
    # Small shapes consistent with the module's forward:
    #   real model: (B, 124, 768) -> flatten -> Linear(768*124, 1024) -> relu
    #               -> Linear(1024, num_classes)
    #   scaled:     (B, 8, 32)    -> flatten -> Linear(256, 256)      -> relu
    #               -> Linear(256, 10)
    B, T, H = 2, 8, 32
    H1, C = 256, 10

    key = jax.random.PRNGKey(0)
    k_h, k_w1, k_b1, k_w2, k_b2 = jax.random.split(key, 5)

    hidden = jax.random.normal(k_h, (B, T, H), dtype=jnp.float32)
    # nn.Linear weights stored transposed relative to torch's (out, in); same math.
    w1 = jax.random.normal(k_w1, (T * H, H1), dtype=jnp.float32) * 0.02
    b1 = jax.random.normal(k_b1, (1, H1), dtype=jnp.float32) * 0.02
    w2 = jax.random.normal(k_w2, (H1, C), dtype=jnp.float32) * 0.02
    b2 = jax.random.normal(k_b2, (1, C), dtype=jnp.float32) * 0.02

    # One-time parameter prep (fc1 weight -> bf16); never redone per call.
    w1_bf16, b1_p, w2_p, b2_p = prepare_head_params(w1, b1, w2, b2)

    head_fn = jax.jit(wav2vec2_ll_head)
    out = head_fn(hidden, w1_bf16, b1_p, w2_p, b2_p)
    out = jax.block_until_ready(out)

    # Pure-JAX reference (with the same bf16 rounding on the fc1 operands).
    x_flat = hidden.reshape(B, -1)
    xb = x_flat.astype(jnp.bfloat16).astype(jnp.float32)
    w1b = w1.astype(jnp.bfloat16).astype(jnp.float32)
    ref = jnp.maximum(xb @ w1b + b1, 0.0) @ w2 + b2

    assert out.shape == (B, C)
    assert jnp.allclose(out, ref, atol=2e-3, rtol=2e-3), "mismatch vs reference"

    print("KERNEL_OK")
</pallas_src>

<mosaic_0001>
module attributes {stable_mosaic.version = 11 : i64} {
  func.func @head_kernel(%arg0: i32, %arg1: i32, %arg2: memref<16x256xbf16, #tpu.memory_space<vmem>>, %arg3: memref<256x256xbf16, #tpu.memory_space<vmem>>, %arg4: memref<1x256xf32, #tpu.memory_space<vmem>>, %arg5: memref<256x10xf32, #tpu.memory_space<vmem>>, %arg6: memref<1x16x10xf32, #tpu.memory_space<vmem>>, %arg7: memref<16x256xf32, #tpu.memory_space<vmem>>) attributes {dimension_semantics = [#tpu.dimension_semantics<parallel>, #tpu.dimension_semantics<arbitrary>], iteration_bounds = array<i64: 1, 1>, scalar_prefetch = 0 : i64, scratch_operands = 1 : i64, tpu.core_type = #tpu.core_type<tc>, window_params = [{pipeline_mode = #tpu.pipeline_mode<synchronous>, transform_indices = @transform_0, window_bounds = array<i64: 16, 256>}, {transform_indices = @transform_1, window_bounds = array<i64: 256, 256>}, {transform_indices = @transform_2, window_bounds = array<i64: 1, 256>}, {transform_indices = @transform_3, window_bounds = array<i64: 256, 10>}, {transform_indices = @transform_4, window_bounds = array<i64: 1, 16, 10>}]} {
    %c0_i32 = arith.constant 0 : i32
    %0 = arith.cmpi eq, %arg1, %c0_i32 : i32
    %1 = arith.extui %0 : i1 to i32
    %c0_i32_0 = arith.constant 0 : i32
    %2 = arith.cmpi ne, %1, %c0_i32_0 : i32
    scf.if %2 {
      %cst_9 = arith.constant 0.000000e+00 : f32
      %15 = vector.broadcast %cst_9 : f32 to vector<16x256xf32>
      %c0_10 = arith.constant 0 : index
      %c0_11 = arith.constant 0 : index
      %16 = vector.load %arg7[%c0_10, %c0_11] : memref<16x256xf32, #tpu.memory_space<vmem>>, vector<16x256xf32>
      tpu.vector_store %arg7[%c0_10, %c0_11], %15 {strides = array<i32>} : memref<16x256xf32, #tpu.memory_space<vmem>>, vector<16x256xf32>,
    } else {
    }
    %c256_i32 = arith.constant 256 : i32
    %3 = arith.muli %arg1, %c256_i32 : i32
    %4 = tpu.assume_multiple %3, 128 : i32
    %c0 = arith.constant 0 : index
    %5 = arith.index_cast %4 : i32 to index
    %6 = vector.load %arg2[%c0, %5] : memref<16x256xbf16, #tpu.memory_space<vmem>>, vector<16x256xbf16>
    %c0_1 = arith.constant 0 : index
    %c0_2 = arith.constant 0 : index
    %7 = vector.load %arg7[%c0_1, %c0_2] : memref<16x256xf32, #tpu.memory_space<vmem>>, vector<16x256xf32>
    %c0_3 = arith.constant 0 : index
    %c0_4 = arith.constant 0 : index
    %8 = vector.load %arg3[%c0_3, %c0_4] : memref<256x256xbf16, #tpu.memory_space<vmem>>, vector<256x256xbf16>
    %cst = arith.constant dense<0.000000e+00> : vector<16x256xf32>
    %9 = tpu.matmul %6, %8, %cst {dimension_numbers = #tpu.dot_dimension_numbers<[1], [0], [0], [1], [0, 0, 1, 1], [], []>} : vector<16x256xbf16>, vector<256x256xbf16>, vector<16x256xf32> -> vector<16x256xf32>
    %10 = arith.addf %7, %9 : vector<16x256xf32>
    %c0_5 = arith.constant 0 : index
    %c0_6 = arith.constant 0 : index
    %11 = vector.load %arg7[%c0_5, %c0_6] : memref<16x256xf32, #tpu.memory_space<vmem>>, vector<16x256xf32>
    tpu.vector_store %arg7[%c0_5, %c0_6], %10 {strides = array<i32>} : memref<16x256xf32, #tpu.memory_space<vmem>>, vector<16x256xf32>,
    %c0_i32_7 = arith.constant 0 : i32
    %12 = arith.cmpi eq, %arg1, %c0_i32_7 : i32
    %13 = arith.extui %12 : i1 to i32
    %c0_i32_8 = arith.constant 0 : i32
    %14 = arith.cmpi ne, %13, %c0_i32_8 : i32
    scf.if %14 {
      %c0_9 = arith.constant 0 : index
      %c0_10 = arith.constant 0 : index
      %15 = vector.load %arg7[%c0_9, %c0_10] : memref<16x256xf32, #tpu.memory_space<vmem>>, vector<16x256xf32>
      %c0_11 = arith.constant 0 : index
      %c0_12 = arith.constant 0 : index
      %16 = vector.load %arg4[%c0_11, %c0_12] : memref<1x256xf32, #tpu.memory_space<vmem>>, vector<1x256xf32>
      %17 = vector.broadcast %16 : vector<1x256xf32> to vector<16x256xf32>
      %18 = arith.addf %15, %17 : vector<16x256xf32>
      %cst_13 = arith.constant 0.000000e+00 : f32
      %19 = vector.broadcast %cst_13 : f32 to vector<16x256xf32>
      %20 = arith.maximumf %18, %19 : vector<16x256xf32>
      %c0_14 = arith.constant 0 : index
      %c0_15 = arith.constant 0 : index
      %21 = vector.load %arg5[%c0_14, %c0_15] : memref<256x10xf32, #tpu.memory_space<vmem>>, vector<256x10xf32>
      %cst_16 = arith.constant dense<0.000000e+00> : vector<16x10xf32>
      %22 = tpu.matmul %20, %21, %cst_16 {dimension_numbers = #tpu.dot_dimension_numbers<[1], [0], [0], [1], [0, 0, 1, 1], [], []>} : vector<16x256xf32>, vector<256x10xf32>, vector<16x10xf32> -> vector<16x10xf32>
      %23 = vector.shape_cast %22 : vector<16x10xf32> to vector<1x16x10xf32>
      %c0_17 = arith.constant 0 : index
      %c0_18 = arith.constant 0 : index
      %c0_19 = arith.constant 0 : index
      %24 = vector.load %arg6[%c0_17, %c0_18, %c0_19] : memref<1x16x10xf32, #tpu.memory_space<vmem>>, vector<1x16x10xf32>
      tpu.vector_store %arg6[%c0_17, %c0_18, %c0_19], %23 {strides = array<i32>} : memref<1x16x10xf32, #tpu.memory_space<vmem>>, vector<1x16x10xf32>,
    } else {
    }
    return
  }
  func.func @transform_0(%arg0: i32, %arg1: i32) -> (i32, i32) {
    %c0_i32 = arith.constant 0 : i32
    %c0_i32_0 = arith.constant 0 : i32
    %c0_i32_1 = arith.constant 0 : i32
    return %c0_i32, %c0_i32_0 : i32, i32
  }
  func.func @transform_1(%arg0: i32, %arg1: i32) -> (i32, i32) {
    %c0_i32 = arith.constant 0 : i32
    return %arg1, %arg0 : i32, i32
  }
  func.func @transform_2(%arg0: i32, %arg1: i32) -> (i32, i32) {
    %c0_i32 = arith.constant 0 : i32
    %c0_i32_0 = arith.constant 0 : i32
    return %c0_i32, %arg0 : i32, i32
  }
  func.func @transform_3(%arg0: i32, %arg1: i32) -> (i32, i32) {
    %c0_i32 = arith.constant 0 : i32
    %c0_i32_0 = arith.constant 0 : i32
    return %arg0, %c0_i32 : i32, i32
  }
  func.func @transform_4(%arg0: i32, %arg1: i32) -> (i32, i32, i32) {
    %c0_i32 = arith.constant 0 : i32
    %c0_i32_0 = arith.constant 0 : i32
    %c0_i32_1 = arith.constant 0 : i32
    return %arg0, %c0_i32, %c0_i32_0 : i32, i32, i32
  }
}

</mosaic_0001>

<llo_original>
// kernel: wav2vec2_ll_head.1
$region0: #{wav2vec2_ll_head.1}
  #allocation0 [shape = 'u32[]', space=smem, size = 0x4, offset = 0x4, fixed_abs, tag = 'smem constant byte address 0x4 - core index']
  #allocation1 [shape = 'u32[144,128]{1,0:T(1,128)}', space=vmem, size = 0x12000, scoped, tag = 'internal scratch']
  #allocation2 [shape = 'f32[16,256]{1,0:T(8,128)}', space=vmem, size = 0x4000, scoped, tag = 'scratch operand']
  %s0 = inlined_call_operand.vmem [shape: bf16[16,256], index: 0, kind: input, shape index: {}]
  %s1 = inlined_call_operand.vmem [shape: bf16[256,256], index: 1, kind: input, shape index: {}]
  %s2 = inlined_call_operand.vmem [shape: f32[1,256], index: 2, kind: input, shape index: {}]
  %s3 = inlined_call_operand.vmem [shape: f32[256,10], index: 3, kind: input, shape index: {}]
  %s4 = inlined_call_operand.vmem [shape: f32[1,16,10], index: 4, kind: output, shape index: {}]
  %s5 = sld [smem:[#allocation0]]
  $region34: #{wav2vec2_ll_head.1} parent=0
    _
  %s7 = ssub.s32 1, %s5
  %s8 = scalar_select 0, %s7, %s5
  // Predicated region
  $region2: #{wav2vec2_ll_head.1} parent=0 // pred_check
    _
  $region3: #{wav2vec2_ll_head.1} parent=0 // pred_check_branch
    %10 = sbr.rel (0) target = $region5
  $region4: #{wav2vec2_ll_head.1} parent=0 // pred_region
    _
  $region5: #{wav2vec2_ll_head.1} parent=0 // pred_fallthru
    _
  // Predicated region
  $region6: #{wav2vec2_ll_head.1} parent=0 // pred_check
    _
  $region7: #{wav2vec2_ll_head.1} parent=0 // pred_check_branch
    %12 = sbr.rel (0) target = $region9
  $region8: #{wav2vec2_ll_head.1} parent=0 // pred_region
    _
  $region9: #{wav2vec2_ll_head.1} parent=0 // pred_fallthru
    _
  // Predicated region
  $region10: #{wav2vec2_ll_head.1} parent=0 // pred_check
    _
  $region11: #{wav2vec2_ll_head.1} parent=0 // pred_check_branch
    %14 = sbr.rel (0) target = $region13
  $region12: #{wav2vec2_ll_head.1} parent=0 // pred_region
    _
  $region13: #{wav2vec2_ll_head.1} parent=0 // pred_fallthru
    _
  // Predicated region
  $region14: #{wav2vec2_ll_head.1} parent=0 // pred_check
    _
  $region15: #{wav2vec2_ll_head.1} parent=0 // pred_check_branch
    %16 = sbr.rel (0) target = $region17
  $region16: #{wav2vec2_ll_head.1} parent=0 // pred_region
    _
  $region17: #{wav2vec2_ll_head.1} parent=0 // pred_fallthru
    _
  %p17 = scmp.eq.s32.totalorder 0, 0
  // Predicated region
  $region18: #{wav2vec2_ll_head.1} parent=0 // pred_check
    %p18 = pneg %p17
  $region19: #{wav2vec2_ll_head.1} parent=0 // pred_check_branch
    %20 = sbr.rel (%p18) target = $region21
  $region20: #{wav2vec2_ll_head.1} parent=0 // pred_region
    %21 = vst [vmem:[#allocation2] sm:$0xff] 0.0
    %22 = vst [vmem:[#allocation2 + $0x8] sm:$0xff] 0.0
    %23 = vst [vmem:[#allocation2 + $0x10] sm:$0xff] 0.0
    %24 = vst [vmem:[#allocation2 + $0x18] sm:$0xff] 0.0
  $region21: #{wav2vec2_ll_head.1} parent=0 // pred_fallthru
    _
  %s25 = smul.u32 0, 256
  %s26 = sshra.s32 %s25, 7
  %s27 = sand.u32 %s25, 127
  %s28 = smul.addr %s26, 4
  %s29 = scalar_lea.vmem %s0, %s28
  %v30 = vld [vmem:[%s29] sm:$0xff]
  %v31 = vld [vmem:[%s29 + $0x8] sm:$0xff]
  %v32 = vld [vmem:[#allocation2] sm:$0xff]
  %v33 = vld [vmem:[#allocation2 + $0x8] sm:$0xff]
  %v34 = vld [vmem:[#allocation2 + $0x10] sm:$0xff]
  %v35 = vld [vmem:[#allocation2 + $0x18] sm:$0xff]
  %v36 = vld [vmem:[%s1] sm:$0xff]
  %v37 = vld [vmem:[%s1 + $0x8] sm:$0xff]
  %v38 = vld [vmem:[%s1 + $0x10] sm:$0xff]
  %v39 = vld [vmem:[%s1 + $0x18] sm:$0xff]
  %v40 = vld [vmem:[%s1 + $0x20] sm:$0xff]
  %v41 = vld [vmem:[%s1 + $0x28] sm:$0xff]
  %v42 = vld [vmem:[%s1 + $0x30] sm:$0xff]
  %v43 = vld [vmem:[%s1 + $0x38] sm:$0xff]
  %v44 = vld [vmem:[%s1 + $0x40] sm:$0xff]
  %v45 = vld [vmem:[%s1 + $0x48] sm:$0xff]
  %v46 = vld [vmem:[%s1 + $0x50] sm:$0xff]
  %v47 = vld [vmem:[%s1 + $0x58] sm:$0xff]
  %v48 = vld [vmem:[%s1 + $0x60] sm:$0xff]
  %v49 = vld [vmem:[%s1 + $0x68] sm:$0xff]
  %v50 = vld [vmem:[%s1 + $0x70] sm:$0xff]
  %v51 = vld [vmem:[%s1 + $0x78] sm:$0xff]
  %v52 = vld [vmem:[%s1 + $0x80] sm:$0xff]
  %v53 = vld [vmem:[%s1 + $0x88] sm:$0xff]
  %v54 = vld [vmem:[%s1 + $0x90] sm:$0xff]
  %v55 = vld [vmem:[%s1 + $0x98] sm:$0xff]
  %v56 = vld [vmem:[%s1 + $0xa0] sm:$0xff]
  %v57 = vld [vmem:[%s1 + $0xa8] sm:$0xff]
  %v58 = vld [vmem:[%s1 + $0xb0] sm:$0xff]
  %v59 = vld [vmem:[%s1 + $0xb8] sm:$0xff]
  %v60 = vld [vmem:[%s1 + $0xc0] sm:$0xff]
  %v61 = vld [vmem:[%s1 + $0xc8] sm:$0xff]
  %v62 = vld [vmem:[%s1 + $0xd0] sm:$0xff]
  %v63 = vld [vmem:[%s1 + $0xd8] sm:$0xff]
  %v64 = vld [vmem:[%s1 + $0xe0] sm:$0xff]
  %v65 = vld [vmem:[%s1 + $0xe8] sm:$0xff]
  %v66 = vld [vmem:[%s1 + $0xf0] sm:$0xff]
  %v67 = vld [vmem:[%s1 + $0xf8] sm:$0xff]
  %v70 = vunpack.c.l.b16 %v30
  %v71 = vunpack.c.h.b16 %v30
  %v72 = vunpack.c.l.b16 %v31
  %v73 = vunpack.c.h.b16 %v31
  %v74 = vpack.c.b16 %v72, %v70
  %v75 = vpack.c.b16 %v73, %v71
  %v110 = vunpack.c.l.b16 %v36
  %v111 = vunpack.c.h.b16 %v36
  %v112 = vunpack.c.l.b16 %v37
  %v113 = vunpack.c.h.b16 %v37
  %v114 = vunpack.c.l.b16 %v38
  %v115 = vunpack.c.h.b16 %v38
  %v116 = vunpack.c.l.b16 %v39
  %v117 = vunpack.c.h.b16 %v39
  %v118 = vunpack.c.l.b16 %v40
  %v119 = vunpack.c.h.b16 %v40
  %v120 = vunpack.c.l.b16 %v41
  %v121 = vunpack.c.h.b16 %v41
  %v122 = vunpack.c.l.b16 %v42
  %v123 = vunpack.c.h.b16 %v42
  %v124 = vunpack.c.l.b16 %v43
  %v125 = vunpack.c.h.b16 %v43
  %v126 = vunpack.c.l.b16 %v44
  %v127 = vunpack.c.h.b16 %v44
  %v128 = vunpack.c.l.b16 %v45
  %v129 = vunpack.c.h.b16 %v45
  %v130 = vunpack.c.l.b16 %v46
  %v131 = vunpack.c.h.b16 %v46
  %v132 = vunpack.c.l.b16 %v47
  %v133 = vunpack.c.h.b16 %v47
  %v134 = vunpack.c.l.b16 %v48
  %v135 = vunpack.c.h.b16 %v48
  %v136 = vunpack.c.l.b16 %v49
  %v137 = vunpack.c.h.b16 %v49
  %v138 = vunpack.c.l.b16 %v50
  %v139 = vunpack.c.h.b16 %v50
  %v140 = vunpack.c.l.b16 %v51
  %v141 = vunpack.c.h.b16 %v51
  %v142 = vunpack.c.l.b16 %v52
  %v143 = vunpack.c.h.b16 %v52
  %v144 = vunpack.c.l.b16 %v53
  %v145 = vunpack.c.h.b16 %v53
  %v146 = vunpack.c.l.b16 %v54
  %v147 = vunpack.c.h.b16 %v54
  %v148 = vunpack.c.l.b16 %v55
  %v149 = vunpack.c.h.b16 %v55
  %v150 = vunpack.c.l.b16 %v56
  %v151 = vunpack.c.h.b16 %v56
  %v152 = vunpack.c.l.b16 %v57
  %v153 = vunpack.c.h.b16 %v57
  %v154 = vunpack.c.l.b16 %v58
  %v155 = vunpack.c.h.b16 %v58
  %v156 = vunpack.c.l.b16 %v59
  %v157 = vunpack.c.h.b16 %v59
  %v158 = vunpack.c.l.b16 %v60
  %v159 = vunpack.c.h.b16 %v60
  %v160 = vunpack.c.l.b16 %v61
  %v161 = vunpack.c.h.b16 %v61
  %v162 = vunpack.c.l.b16 %v62
  %v163 = vunpack.c.h.b16 %v62
  %v164 = vunpack.c.l.b16 %v63
  %v165 = vunpack.c.h.b16 %v63
  %v166 = vunpack.c.l.b16 %v64
  %v167 = vunpack.c.h.b16 %v64
  %v168 = vunpack.c.l.b16 %v65
  %v169 = vunpack.c.h.b16 %v65
  %v170 = vunpack.c.l.b16 %v66
  %v171 = vunpack.c.h.b16 %v66
  %v172 = vunpack.c.l.b16 %v67
  %v173 = vunpack.c.h.b16 %v67
  %v174 = vpack.c.b16 %v112, %v110
  %v175 = vpack.c.b16 %v113, %v111
  %v176 = vpack.c.b16 %v116, %v114
  %v177 = vpack.c.b16 %v117, %v115
  %v178 = vpack.c.b16 %v120, %v118
  %v179 = vpack.c.b16 %v121, %v119
  %v180 = vpack.c.b16 %v124, %v122
  %v181 = vpack.c.b16 %v125, %v123
  %v182 = vpack.c.b16 %v128, %v126
  %v183 = vpack.c.b16 %v129, %v127
  %v184 = vpack.c.b16 %v132, %v130
  %v185 = vpack.c.b16 %v133, %v131
  %v186 = vpack.c.b16 %v136, %v134
  %v187 = vpack.c.b16 %v137, %v135
  %v188 = vpack.c.b16 %v140, %v138
  %v189 = vpack.c.b16 %v141, %v139
  %v190 = vpack.c.b16 %v144, %v142
  %v191 = vpack.c.b16 %v145, %v143
  %v192 = vpack.c.b16 %v148, %v146
  %v193 = vpack.c.b16 %v149, %v147
  %v194 = vpack.c.b16 %v152, %v150
  %v195 = vpack.c.b16 %v153, %v151
  %v196 = vpack.c.b16 %v156, %v154
  %v197 = vpack.c.b16 %v157, %v155
  %v198 = vpack.c.b16 %v160, %v158
  %v199 = vpack.c.b16 %v161, %v159
  %v200 = vpack.c.b16 %v164, %v162
  %v201 = vpack.c.b16 %v165, %v163
  %v202 = vpack.c.b16 %v168, %v166
  %v203 = vpack.c.b16 %v169, %v167
  %v204 = vpack.c.b16 %v172, %v170
  %v205 = vpack.c.b16 %v173, %v171
  %238 = vmatprep.subr.bf16.mxu0 %v175
  %239 = vmatpush1.bf16.msra.mxu0 %v174
  %240 = vmatprep.subr.bf16.mxu0 %v177
  %241 = vmatpush1.bf16.msra.mxu0 %v176
  %242 = vmatprep.subr.bf16.mxu0 %v179
  %243 = vmatpush1.bf16.msra.mxu0 %v178
  %244 = vmatprep.subr.bf16.mxu0 %v181
  %245 = vmatpush1.bf16.msra.mxu0 %v180
  %246 = vmatprep.subr.bf16.mxu0 %v183
  %247 = vmatpush1.bf16.msra.mxu0 %v182
  %248 = vmatprep.subr.bf16.mxu0 %v185
  %249 = vmatpush1.bf16.msra.mxu0 %v184
  %250 = vmatprep.subr.bf16.mxu0 %v187
  %251 = vmatpush1.bf16.msra.mxu0 %v186
  %252 = vmatprep.subr.bf16.mxu0 %v189
  %253 = vmatpush1.bf16.msra.mxu0 %v188
  %254 = vmatprep.subr.bf16.mxu0 %v191
  %255 = vmatpush1.bf16.msra.mxu0 %v190
  %256 = vmatprep.subr.bf16.mxu0 %v193
  %257 = vmatpush1.bf16.msra.mxu0 %v192
  %258 = vmatprep.subr.bf16.mxu0 %v195
  %259 = vmatpush1.bf16.msra.mxu0 %v194
  %260 = vmatprep.subr.bf16.mxu0 %v197
  %261 = vmatpush1.bf16.msra.mxu0 %v196
  %262 = vmatprep.subr.bf16.mxu0 %v199
  %263 = vmatpush1.bf16.msra.mxu0 %v198
  %264 = vmatprep.subr.bf16.mxu0 %v201
  %265 = vmatpush1.bf16.msra.mxu0 %v200
  %266 = vmatprep.subr.bf16.mxu0 %v203
  %267 = vmatpush1.bf16.msra.mxu0 %v202
  %268 = vmatprep.subr.bf16.mxu0 %v205
  %269 = vmatpush1.bf16.msra.mxu0 %v204
  %270 = vmatprep.mubr.bf16.mxu0 %v75
  %271 = vmatmul.mubr.bf16.gmra.mrb[0].mxu0 %v74
  %v272 = vpop.f32.mrb[0].mxu0
  %v273 = vadd.f32 0.0, %v272
  %v274 = vpop.f32.mrb[0].mxu0
  %v275 = vadd.f32 0.0, %v274
  %v276 = vpop.f32.mrb[0].mxu0
  %v277 = vadd.f32 0.0, %v276
  %v278 = vpop.f32.mrb[0].mxu0
  %v279 = vadd.f32 0.0, %v278
  %280 = vdwg.mxu0
  %v281 = vadd.f32 %v32, %v273
  %v282 = vadd.f32 %v33, %v275
  %v283 = vadd.f32 %v34, %v277
  %v284 = vadd.f32 %v35, %v279
  %285 = vst [vmem:[#allocation2] sm:$0xff] %v281
  %286 = vst [vmem:[#allocation2 + $0x8] sm:$0xff] %v282
  %287 = vst [vmem:[#allocation2 + $0x10] sm:$0xff] %v283
  %288 = vst [vmem:[#allocation2 + $0x18] sm:$0xff] %v284
  // Predicated region
  $region22: #{wav2vec2_ll_head.1} parent=0 // pred_check
    %p289 = pneg %p17
  $region23: #{wav2vec2_ll_head.1} parent=0 // pred_check_branch
    %291 = sbr.rel (%p289) target = $region25
  $region24: #{wav2vec2_ll_head.1} parent=0 // pred_region
    %v292 = vld [vmem:[#allocation2] sm:$0xff]
    %v293 = vld [vmem:[#allocation2 + $0x8] sm:$0xff]
    %v294 = vld [vmem:[#allocation2 + $0x10] sm:$0xff]
    %v295 = vld [vmem:[#allocation2 + $0x18] sm:$0xff]
    %v296 = vld [vmem:[%s2] sm:$0x3]
    %v298 = vlaneseq
    %v299 = vshrl.u32 %v298, 7
    %v300 = vsub.s32 0, %v299
    %v301 = vrot.slane %v296, %v300
    %v302 = vlaneseq
    %v303 = vshrl.u32 %v302, 7
    %v304 = vsub.s32 1, %v303
    %v305 = vrot.slane %v296, %v304
    %v308 = vadd.f32 %v292, %v301
    %v309 = vadd.f32 %v293, %v305
    %v310 = vadd.f32 %v294, %v301
    %v311 = vadd.f32 %v295, %v305
    %v312 = vmax.f32 %v308, 0.0
    %v313 = vmax.f32 %v309, 0.0
    %v314 = vmax.f32 %v310, 0.0
    %v315 = vmax.f32 %v311, 0.0
    %v316 = vld [vmem:[%s3] sm:$0xff]
    %v317 = vld [vmem:[%s3 + $0x8] sm:$0xff]
    %v318 = vld [vmem:[%s3 + $0x10] sm:$0xff]
    %v319 = vld [vmem:[%s3 + $0x18] sm:$0xff]
    %v320 = vld [vmem:[%s3 + $0x20] sm:$0xff]
    %v321 = vld [vmem:[%s3 + $0x28] sm:$0xff]
    %v322 = vld [vmem:[%s3 + $0x30] sm:$0xff]
    %v323 = vld [vmem:[%s3 + $0x38] sm:$0xff]
    %v324 = vld [vmem:[%s3 + $0x40] sm:$0xff]
    %v325 = vld [vmem:[%s3 + $0x48] sm:$0xff]
    %v326 = vld [vmem:[%s3 + $0x50] sm:$0xff]
    %v327 = vld [vmem:[%s3 + $0x58] sm:$0xff]
    %v328 = vld [vmem:[%s3 + $0x60] sm:$0xff]
    %v329 = vld [vmem:[%s3 + $0x68] sm:$0xff]
    %v330 = vld [vmem:[%s3 + $0x70] sm:$0xff]
    %v331 = vld [vmem:[%s3 + $0x78] sm:$0xff]
    %v332 = vld [vmem:[%s3 + $0x80] sm:$0xff]
    %v333 = vld [vmem:[%s3 + $0x88] sm:$0xff]
    %v334 = vld [vmem:[%s3 + $0x90] sm:$0xff]
    %v335 = vld [vmem:[%s3 + $0x98] sm:$0xff]
    %v336 = vld [vmem:[%s3 + $0xa0] sm:$0xff]
    %v337 = vld [vmem:[%s3 + $0xa8] sm:$0xff]
    %v338 = vld [vmem:[%s3 + $0xb0] sm:$0xff]
    %v339 = vld [vmem:[%s3 + $0xb8] sm:$0xff]
    %v340 = vld [vmem:[%s3 + $0xc0] sm:$0xff]
    %v341 = vld [vmem:[%s3 + $0xc8] sm:$0xff]
    %v342 = vld [vmem:[%s3 + $0xd0] sm:$0xff]
    %v343 = vld [vmem:[%s3 + $0xd8] sm:$0xff]
    %v344 = vld [vmem:[%s3 + $0xe0] sm:$0xff]
    %v345 = vld [vmem:[%s3 + $0xe8] sm:$0xff]
    %v346 = vld [vmem:[%s3 + $0xf0] sm:$0xff]
    %v347 = vld [vmem:[%s3 + $0xf8] sm:$0xff]
    %348 = vmatprep.subr.mxu0 0.0
    %349 = vmatpush1.msra.mxu0 %v316
    %350 = vmatprep.subr.mxu0 0.0
    %351 = vmatpush1.msra.mxu0 %v317
    %352 = vmatprep.subr.mxu0 0.0
    %353 = vmatpush1.msra.mxu0 %v318
    %354 = vmatprep.subr.mxu0 0.0
    %355 = vmatpush1.msra.mxu0 %v319
    %356 = vmatprep.subr.mxu0 0.0
    %357 = vmatpush1.msra.mxu0 %v320
    %358 = vmatprep.subr.mxu0 0.0
    %359 = vmatpush1.msra.mxu0 %v321
    %360 = vmatprep.subr.mxu0 0.0
    %361 = vmatpush1.msra.mxu0 %v322
    %362 = vmatprep.subr.mxu0 0.0
    %363 = vmatpush1.msra.mxu0 %v323
    %364 = vmatprep.subr.mxu0 0.0
    %365 = vmatpush1.msra.mxu0 %v324
    %366 = vmatprep.subr.mxu0 0.0
    %367 = vmatpush1.msra.mxu0 %v325
    %368 = vmatprep.subr.mxu0 0.0
    %369 = vmatpush1.msra.mxu0 %v326
    %370 = vmatprep.subr.mxu0 0.0
    %371 = vmatpush1.msra.mxu0 %v327
    %372 = vmatprep.subr.mxu0 0.0
    %373 = vmatpush1.msra.mxu0 %v328
    %374 = vmatprep.subr.mxu0 0.0
    %375 = vmatpush1.msra.mxu0 %v329
    %376 = vmatprep.subr.mxu0 0.0
    %377 = vmatpush1.msra.mxu0 %v330
    %378 = vmatprep.subr.mxu0 0.0
    %379 = vmatpush1.msra.mxu0 %v331
    %380 = vmatprep.subr.mxu0 0.0
    %381 = vmatpush1.msra.mxu0 %v332
    %382 = vmatprep.subr.mxu0 0.0
    %383 = vmatpush1.msra.mxu0 %v333
    %384 = vmatprep.subr.mxu0 0.0
    %385 = vmatpush1.msra.mxu0 %v334
    %386 = vmatprep.subr.mxu0 0.0
    %387 = vmatpush1.msra.mxu0 %v335
    %388 = vmatprep.subr.mxu0 0.0
    %389 = vmatpush1.msra.mxu0 %v336
    %390 = vmatprep.subr.mxu0 0.0
    %391 = vmatpush1.msra.mxu0 %v337
    %392 = vmatprep.subr.mxu0 0.0
    %393 = vmatpush1.msra.mxu0 %v338
    %394 = vmatprep.subr.mxu0 0.0
    %395 = vmatpush1.msra.mxu0 %v339
    %396 = vmatprep.subr.mxu0 0.0
    %397 = vmatpush1.msra.mxu0 %v340
    %398 = vmatprep.subr.mxu0 0.0
    %399 = vmatpush1.msra.mxu0 %v341
    %400 = vmatprep.subr.mxu0 0.0
    %401 = vmatpush1.msra.mxu0 %v342
    %402 = vmatprep.subr.mxu0 0.0
    %403 = vmatpush1.msra.mxu0 %v343
    %404 = vmatprep.subr.mxu0 0.0
    %405 = vmatpush1.msra.mxu0 %v344
    %406 = vmatprep.subr.mxu0 0.0
    %407 = vmatpush1.msra.mxu0 %v345
    %408 = vmatprep.subr.mxu0 0.0
    %409 = vmatpush1.msra.mxu0 %v346
    %410 = vmatprep.subr.mxu0 0.0
    %411 = vmatpush1.msra.mxu0 %v347
    %412 = vmatprep.mubr.f32.mxu0 %v313
    %413 = vmatmul.mubr.f32.gmra.mrb[0].mxu0 %v312
    %v414 = vpop.f32.mrb[0].mxu0
    %v415 = vadd.f32 0.0, %v414
    %v416 = vpop.f32.mrb[0].mxu0
    %417 = vmatprep.mubr.f32.mxu0 %v315
    %418 = vmatmul.mubr.f32.gmra.mrb[0].mxu0 %v314
    %v419 = vpop.f32.mrb[0].mxu0
    %v420 = vadd.f32 0.0, %v419
    %v421 = vpop.f32.mrb[0].mxu0
    %422 = vdwg.mxu0
    %vm423 = vcmask 80896
    %424 = vst.msk [vmem:[%s4] sm:$0xff] %vm423, %v415
    %425 = vst.msk [vmem:[%s4 + $0x8] sm:$0xff] %vm423, %v420
  $region25: #{wav2vec2_ll_head.1} parent=0 // pred_fallthru
    _
  // Predicated region
  $region26: #{wav2vec2_ll_head.1} parent=0 // pred_check
    _
  $region27: #{wav2vec2_ll_head.1} parent=0 // pred_check_branch
    %427 = sbr.rel (0) target = $region29
  $region28: #{wav2vec2_ll_head.1} parent=0 // pred_region
    _
  $region29: #{wav2vec2_ll_head.1} parent=0 // pred_fallthru
    _
  // Predicated region
  $region30: #{wav2vec2_ll_head.1} parent=0 // pred_check
    _
  $region31: #{wav2vec2_ll_head.1} parent=0 // pred_check_branch
    %429 = sbr.rel (0) target = $region33
  $region32: #{wav2vec2_ll_head.1} parent=0 // pred_region
    _
  $region33: #{wav2vec2_ll_head.1} parent=0 // pred_fallthru
    _

</llo_original>
